<compile_context>
chip_gen: v6e
topology: v6e:2x2x1
jax: 0.10.0
libtpu: 0.0.40
codegen_flags: <defaults>
</compile_context>

<pallas_src>
import functools
import numpy as np
import jax
import jax.numpy as jnp
from jax import lax
from jax.experimental import pallas as pl
from jax.experimental.pallas import tpu as pltpu


def _round_up(x, m):
    return (x + m - 1) // m * m


# ---------------------------------------------------------------------------
# ConvTranspose2d(kernel=2, stride=2): one lane-dense matmul per image.
# ---------------------------------------------------------------------------
def _convT_kernel(x_ref, w_ref, b_ref, o_ref):
    # x: (Cin, L), w: (4*Cout, Cin), b: (4*Cout, 1)  ->  o: (4*Cout, L) bf16
    o_ref[...] = (jnp.dot(w_ref[...], x_ref[...],
                          preferred_element_type=jnp.float32)
                  + b_ref[...]).astype(o_ref.dtype)


def conv_transpose2x2_s2(x_ncl, wt, bias, H, W):
    """x_ncl: (N, Cin, H*W); wt: (Cin, Cout, 2, 2); bias: (Cout,).
    Returns up: (N, Cout, (2H)*(2W)) NCHW-flattened, bfloat16."""
    N, Cin, L = x_ncl.shape
    Cout = wt.shape[1]
    # (Cin,Cout,2,2) -> (Cout,2,2,Cin) -> (4*Cout, Cin); row = co*4 + di*2 + dj
    w2 = jnp.transpose(wt, (1, 2, 3, 0)).reshape(4 * Cout, Cin).astype(jnp.float32)
    b2 = jnp.repeat(bias, 4).reshape(4 * Cout, 1).astype(jnp.float32)

    out = pl.pallas_call(
        _convT_kernel,
        out_shape=jax.ShapeDtypeStruct((N, 4 * Cout, L), jnp.bfloat16),
        grid=(N,),
        in_specs=[
            pl.BlockSpec((None, Cin, L), lambda n: (n, 0, 0)),
            pl.BlockSpec((4 * Cout, Cin), lambda n: (0, 0)),
            pl.BlockSpec((4 * Cout, 1), lambda n: (0, 0)),
        ],
        out_specs=pl.BlockSpec((None, 4 * Cout, L), lambda n: (n, 0, 0)),
        compiler_params=pltpu.CompilerParams(dimension_semantics=("parallel",)),
    )(x_ncl, w2, b2)

    # depth-to-space: (N, 4*Cout, H*W) -> (N, Cout, 2H, 2W) -> flattened (bf16).
    # TODO(synk): fuse this lane-interleave scatter into the chain kernel.
    out = out.reshape(N, Cout, 2, 2, H, W)
    out = jnp.transpose(out, (0, 1, 4, 2, 5, 3)).reshape(N, Cout, 4 * H * W)
    return out


# ---------------------------------------------------------------------------
# Fused chain: crop+concat assembly + Conv3x3+PReLU + residual layers, one call.
# ---------------------------------------------------------------------------
def _chain_kernel(up_ref, br_ref, w0_ref, wr_ref, b_ref, a_ref, o_ref, slab_ref,
                  *, Hu, Wu, Cup, Cb, cin0, Cout, n_res, dy, dx):
    L = Hu * Wu
    img = Wu + 1                               # image start lane inside the slab
    c_slab, Lslab = slab_ref.shape

    # (1) zero ONLY the halo/tail lanes (image region is fully overwritten below;
    #     re-done every grid step so it is correct under megacore sharding).
    slab_ref[:, 0:img] = jnp.zeros((c_slab, img), slab_ref.dtype)
    slab_ref[:, img + L:Lslab] = jnp.zeros((c_slab, Lslab - img - L), slab_ref.dtype)

    # (2) fused center_crop + concat: `up` and the cropped bridge land in adjacent
    #     channel rows of the bf16 slab; the cat tensor never exists in HBM.
    slab_ref[0:Cup, img:img + L] = up_ref[...]
    for h in range(Hu):                        # static row scatter of the crop window
        row = img + h * Wu
        slab_ref[Cup:cin0, row:row + Wu] = (
            br_ref[:, dy + h, dx:dx + Wu].astype(slab_ref.dtype))

    # (3) left/right edge masks, generated in-kernel (hoisted out of the layer loop).
    lane = lax.broadcasted_iota(jnp.int32, (1, L), 1)
    col = (lane & (Wu - 1)) if (Wu & (Wu - 1)) == 0 else (lane % Wu)
    not_left = (col != 0).astype(jnp.float32)          # 0.0 where w == 0
    not_right = (col != Wu - 1).astype(jnp.float32)    # 0.0 where w == Wu-1

    def conv3x3_prelu(ci, get_w, bias, alpha):
        """9 accumulating per-tap matmuls over the first `ci` slab channels."""
        acc = None
        for kh in range(3):
            for kw in range(3):
                off = kh * Wu + kw
                tap = slab_ref[0:ci, off:off + L]               # bf16 (ci, L)
                contrib = jnp.dot(get_w(kh, kw), tap,
                                  preferred_element_type=jnp.float32)
                if kw == 0:
                    contrib = contrib * not_left    # cancel horizontal wrap (left)
                elif kw == 2:
                    contrib = contrib * not_right   # cancel horizontal wrap (right)
                acc = contrib if acc is None else acc + contrib
        z = acc + bias                                           # f32 (Cout, L)
        return jnp.where(z >= 0.0, z, alpha * z)                 # PReLU (per-channel ok)

    # layer 0: conv on [up; crop]  (K = cin0)
    y = conv3x3_prelu(cin0, lambda kh, kw: w0_ref[kh * 3 + kw], b_ref[0], a_ref[0])
    # residual layers  (K = Cout only — trimmed)
    for r in range(n_res):
        slab_ref[0:Cout, img:img + L] = y.astype(slab_ref.dtype)
        z = conv3x3_prelu(Cout, lambda kh, kw: wr_ref[r * 9 + kh * 3 + kw],
                          b_ref[r + 1], a_ref[r + 1])
        y = z + y
    o_ref[...] = y.astype(o_ref.dtype)


def conv_chain(up, bridge, dy, dx, c0_w, c0_b, c0_a, res_params, Hu, Wu):
    """up: (N,Cup,L) bf16 NCHW-flattened; bridge: (N,Cb,Hb,Wb) f32 NCHW (uncropped);
    weights in PyTorch OIHW layout."""
    N, Cup, L = up.shape
    Cb, Hb, Wb = bridge.shape[1], bridge.shape[2], bridge.shape[3]
    cin0 = Cup + Cb
    Cout = c0_w.shape[0]
    assert c0_w.shape[1] == cin0 and L == Hu * Wu
    n_res = len(res_params)
    assert n_res >= 1
    n_layers = 1 + n_res

    def pack_w(w_oihw):
        # OIHW -> (kh*3+kw, O, I) in bf16 (per-tap weight matrices)
        return jnp.transpose(w_oihw, (2, 3, 0, 1)).reshape(
            9, w_oihw.shape[0], w_oihw.shape[1]).astype(jnp.bfloat16)

    w0 = pack_w(c0_w)                                               # (9, Cout, cin0)
    wr = jnp.concatenate([pack_w(w) for (w, _, _) in res_params], 0)  # (n_res*9, Cout, Cout)
    b_all = jnp.stack([c0_b] + [b for (_, b, _) in res_params]
                      ).reshape(n_layers, Cout, 1).astype(jnp.float32)
    a_all = jnp.stack(
        [jnp.broadcast_to(jnp.asarray(c0_a, jnp.float32).reshape(-1), (Cout,))]
        + [jnp.broadcast_to(jnp.asarray(a, jnp.float32).reshape(-1), (Cout,))
           for (_, _, a) in res_params]).reshape(n_layers, Cout, 1)

    c_slab = max(cin0, Cout)
    Lslab = _round_up(L + 2 * Wu + 2, 128)      # flattened slab with zero halo lanes

    kern = functools.partial(_chain_kernel, Hu=Hu, Wu=Wu, Cup=Cup, Cb=Cb, cin0=cin0,
                             Cout=Cout, n_res=n_res, dy=dy, dx=dx)

    # --- VMEM budget: everything live, clamped to the physical VMEM of this chip ---
    def nbytes(shape, dt):
        return int(np.prod(shape)) * jnp.dtype(dt).itemsize

    est = (2 * (nbytes((Cup, L), jnp.bfloat16)            # up (double-buffered)
                + nbytes((Cb, Hb, Wb), jnp.float32)       # bridge
                + nbytes((Cout, L), jnp.float32))         # output
           + 2 * (nbytes(w0.shape, jnp.bfloat16) + nbytes(wr.shape, jnp.bfloat16))
           + 4 * nbytes((n_layers, Cout, 128), jnp.float32)   # bias/alpha (lane-padded)
           + nbytes((c_slab, Lslab), jnp.bfloat16)            # resident slab
           + 8 * nbytes((Cout, L), jnp.float32)               # accumulators / temps
           + nbytes((cin0, L), jnp.bfloat16)                  # widest live tap
           + (4 << 20))
    try:
        phys = int(getattr(pltpu.get_tpu_info(), "vmem_capacity_bytes", 64 << 20))
    except Exception:
        phys = 64 << 20
    cap = min(100 << 20, (phys * 3) // 4)       # ~48 MiB on v7x, ~96-100 MiB on v5e/v6e
    vmem_limit = int(min(max(est, 32 << 20), cap))

    out = pl.pallas_call(
        kern,
        out_shape=jax.ShapeDtypeStruct((N, Cout, L), jnp.float32),
        grid=(N,),
        in_specs=[
            pl.BlockSpec((None, Cup, L), lambda n: (n, 0, 0)),
            pl.BlockSpec((None, Cb, Hb, Wb), lambda n: (n, 0, 0, 0)),
            pl.BlockSpec((9, Cout, cin0), lambda n: (0, 0, 0)),
            pl.BlockSpec((n_res * 9, Cout, Cout), lambda n: (0, 0, 0)),
            pl.BlockSpec((n_layers, Cout, 1), lambda n: (0, 0, 0)),
            pl.BlockSpec((n_layers, Cout, 1), lambda n: (0, 0, 0)),
        ],
        out_specs=pl.BlockSpec((None, Cout, L), lambda n: (n, 0, 0)),
        scratch_shapes=[pltpu.VMEM((c_slab, Lslab), jnp.bfloat16)],
        compiler_params=pltpu.CompilerParams(
            dimension_semantics=("parallel",),
            vmem_limit_bytes=vmem_limit),
    )(up, bridge, w0, wr, b_all, a_all)
    return out


# ---------------------------------------------------------------------------
# Full UNetUpBlock forward (NCHW in / NCHW out, like the PyTorch module)
# ---------------------------------------------------------------------------
def unet_up_block_forward(params, x_nchw, bridge_nchw):
    N, Cin, H, W = x_nchw.shape
    Hu, Wu = 2 * H, 2 * W

    x_flat = x_nchw.reshape(N, Cin, H * W)
    up = conv_transpose2x2_s2(x_flat, params["up_w"], params["up_b"], H, W)

    # center_crop offsets are static; the crop itself is fused into the chain kernel.
    Hb, Wb = bridge_nchw.shape[2], bridge_nchw.shape[3]
    dy, dx = (Hb - Hu) // 2, (Wb - Wu) // 2

    out = conv_chain(up, bridge_nchw, dy, dx,
                     params["c0_w"], params["c0_b"], params["c0_a"],
                     params["res"], Hu, Wu)
    return out.reshape(N, -1, Hu, Wu)


# ---------------------------------------------------------------------------
# Pure-JAX reference (mirrors the PyTorch forward in f32 NCHW) for verification
# ---------------------------------------------------------------------------
def reference_forward(params, x, bridge):
    N, Cin, H, W = x.shape
    wt = params["up_w"]                                   # (Cin,Cout,2,2)
    Cout = wt.shape[1]
    t = jnp.einsum('ncij,codk->noidjk', x, wt)
    up = t.reshape(N, Cout, 2 * H, 2 * W) + params["up_b"][None, :, None, None]
    Hu, Wu = 2 * H, 2 * W
    Hb, Wb = bridge.shape[2], bridge.shape[3]
    dy, dx = (Hb - Hu) // 2, (Wb - Wu) // 2
    crop = bridge[:, :, dy:dy + Hu, dx:dx + Wu]
    out = jnp.concatenate([up, crop], axis=1)

    def conv(z, w, b):
        y = lax.conv_general_dilated(z, w, (1, 1), ((1, 1), (1, 1)),
                                     dimension_numbers=('NCHW', 'OIHW', 'NCHW'))
        return y + b[None, :, None, None]

    def prelu(z, a):
        return jnp.where(z >= 0, z, a * z)

    h = prelu(conv(out, params["c0_w"], params["c0_b"]), params["c0_a"])
    for (w, b, a) in params["res"]:
        h = prelu(conv(h, w, b), a) + h
    return h


if __name__ == "__main__":
    in_size, out_size, num = 8, 4, 2
    N, H, W = 2, 16, 16
    Hb = Wb = 2 * H + 2      # bridge slightly larger -> exercises center_crop

    key = jax.random.PRNGKey(0)
    ks = jax.random.split(key, 10)
    params = {
        "up_w": 0.1 * jax.random.normal(ks[0], (in_size, out_size, 2, 2), jnp.float32),
        "up_b": 0.1 * jax.random.normal(ks[1], (out_size,), jnp.float32),
        "c0_w": 0.1 * jax.random.normal(ks[2], (out_size, in_size, 3, 3), jnp.float32),
        "c0_b": 0.1 * jax.random.normal(ks[3], (out_size,), jnp.float32),
        "c0_a": jnp.float32(0.25),   # nn.PReLU() default init
        "res": [],
    }
    for i in range(max(num - 1, 1)):
        params["res"].append((
            0.1 * jax.random.normal(ks[4 + 2 * i], (out_size, out_size, 3, 3), jnp.float32),
            0.1 * jax.random.normal(ks[5 + 2 * i], (out_size,), jnp.float32),
            jnp.float32(0.25),
        ))

    x = jax.random.normal(ks[8], (N, in_size, H, W), jnp.float32)
    bridge = jax.random.normal(ks[9], (N, out_size, Hb, Wb), jnp.float32)

    out = jax.block_until_ready(unet_up_block_forward(params, x, bridge))
    ref = jax.block_until_ready(reference_forward(params, x, bridge))
    # bf16 MXU path -> loosened tolerance (reference is pure f32)
    np.testing.assert_allclose(np.asarray(out), np.asarray(ref), atol=3e-2, rtol=3e-2)
    print("KERNEL_OK")
</pallas_src>

<mosaic_0001>
module attributes {stable_mosaic.version = 11 : i64} {
  func.func @_convT_kernel(%arg0: i32, %arg1: memref<1x8x256xf32, #tpu.memory_space<vmem>>, %arg2: memref<16x8xf32, #tpu.memory_space<vmem>>, %arg3: memref<16x1xf32, #tpu.memory_space<vmem>>, %arg4: memref<1x16x256xbf16, #tpu.memory_space<vmem>>) attributes {dimension_semantics = [#tpu.dimension_semantics<parallel>], iteration_bounds = array<i64: 2>, scalar_prefetch = 0 : i64, scratch_operands = 0 : i64, tpu.core_type = #tpu.core_type<tc>, window_params = [{transform_indices = @transform_0, window_bounds = array<i64: 1, 8, 256>}, {pipeline_mode = #tpu.pipeline_mode<synchronous>, transform_indices = @transform_1, window_bounds = array<i64: 16, 8>}, {pipeline_mode = #tpu.pipeline_mode<synchronous>, transform_indices = @transform_2, window_bounds = array<i64: 16, 1>}, {transform_indices = @transform_3, window_bounds = array<i64: 1, 16, 256>}]} {
    %c0 = arith.constant 0 : index
    %c0_0 = arith.constant 0 : index
    %0 = vector.load %arg2[%c0, %c0_0] : memref<16x8xf32, #tpu.memory_space<vmem>>, vector<16x8xf32>
    %c0_1 = arith.constant 0 : index
    %c0_2 = arith.constant 0 : index
    %c0_3 = arith.constant 0 : index
    %1 = vector.load %arg1[%c0_1, %c0_2, %c0_3] : memref<1x8x256xf32, #tpu.memory_space<vmem>>, vector<1x8x256xf32>
    %2 = vector.shape_cast %1 : vector<1x8x256xf32> to vector<8x256xf32>
    %cst = arith.constant dense<0.000000e+00> : vector<16x256xf32>
    %3 = tpu.matmul %0, %2, %cst {dimension_numbers = #tpu.dot_dimension_numbers<[1], [0], [0], [1], [0, 0, 1, 1], [], []>} : vector<16x8xf32>, vector<8x256xf32>, vector<16x256xf32> -> vector<16x256xf32>
    %c0_4 = arith.constant 0 : index
    %c0_5 = arith.constant 0 : index
    %4 = vector.load %arg3[%c0_4, %c0_5] : memref<16x1xf32, #tpu.memory_space<vmem>>, vector<16x1xf32>
    %5 = vector.broadcast %4 : vector<16x1xf32> to vector<16x256xf32>
    %6 = arith.addf %3, %5 : vector<16x256xf32>
    %7 = arith.truncf %6 : vector<16x256xf32> to vector<16x256xbf16>
    %c0_6 = arith.constant 0 : index
    %c0_7 = arith.constant 0 : index
    %c0_8 = arith.constant 0 : index
    %8 = vector.load %arg4[%c0_6, %c0_7, %c0_8] : memref<1x16x256xbf16, #tpu.memory_space<vmem>>, vector<1x16x256xbf16>
    %9 = vector.shape_cast %8 : vector<1x16x256xbf16> to vector<16x256xbf16>
    %10 = vector.shape_cast %7 : vector<16x256xbf16> to vector<1x16x256xbf16>
    tpu.vector_store %arg4[%c0_6, %c0_7, %c0_8], %10 {strides = array<i32>} : memref<1x16x256xbf16, #tpu.memory_space<vmem>>, vector<1x16x256xbf16>,
    return
  }
  func.func @transform_0(%arg0: i32) -> (i32, i32, i32) {
    %c0_i32 = arith.constant 0 : i32
    %c0_i32_0 = arith.constant 0 : i32
    %c0_i32_1 = arith.constant 0 : i32
    return %arg0, %c0_i32, %c0_i32_0 : i32, i32, i32
  }
  func.func @transform_1(%arg0: i32) -> (i32, i32) {
    %c0_i32 = arith.constant 0 : i32
    %c0_i32_0 = arith.constant 0 : i32
    %c0_i32_1 = arith.constant 0 : i32
    return %c0_i32, %c0_i32_0 : i32, i32
  }
  func.func @transform_2(%arg0: i32) -> (i32, i32) {
    %c0_i32 = arith.constant 0 : i32
    %c0_i32_0 = arith.constant 0 : i32
    %c0_i32_1 = arith.constant 0 : i32
    return %c0_i32, %c0_i32_0 : i32, i32
  }
  func.func @transform_3(%arg0: i32) -> (i32, i32, i32) {
    %c0_i32 = arith.constant 0 : i32
    %c0_i32_0 = arith.constant 0 : i32
    %c0_i32_1 = arith.constant 0 : i32
    return %arg0, %c0_i32, %c0_i32_0 : i32, i32, i32
  }
}

</mosaic_0001>

<llo_original>
// kernel: tpu_custom_call.1
$region0: #{tpu_custom_call.1}
  #allocation0 [shape = 'u32[]', space=smem, size = 0x4, offset = 0x4, fixed_abs, tag = 'smem constant byte address 0x4 - core index']
  #allocation1 [shape = 'u32[144,128]{1,0:T(1,128)}', space=vmem, size = 0x12000, scoped, tag = 'internal scratch']
  %s0 = inlined_call_operand.vmem [shape: f32[2,8,256], index: 0, kind: input, shape index: {}]
  %s1 = inlined_call_operand.vmem [shape: f32[16,8], index: 1, kind: input, shape index: {}]
  %s2 = inlined_call_operand.vmem [shape: f32[16,1], index: 2, kind: input, shape index: {}]
  %s3 = inlined_call_operand.hbm [shape: bf16[2,16,256], index: 3, kind: output, shape index: {}]
  %s4 = sld [smem:[#allocation0]]
  $region45: #{tpu_custom_call.1} parent=0
    _
  %s6 = ssub.s32 1, %s4
  %s7 = scalar_select 0, %s6, %s4
  $region1: #{tpu_custom_call.1} parent=0
    #allocation2 [shape = 'u8[16384]{0}', space=vmem, size = 0x4000, scoped, tag = 'output window, operand 0']
    #allocation3 [shape = 's32[2]{0}', space=sflag, size = 0x8, scoped, tag = 'scoped memory for tpu_custom_call.1']
    %8 = vsyncpa [#allocation3], 0
    %s9 = scalar_lea.sflag [#allocation3], 1
    %10 = vsyncpa %s9, 0
    loop: start=0, step=1, limit=4
    $region2: #{tpu_custom_call.1} parent=1 // loop_pre_header
      _
    $region3: #{tpu_custom_call.1} parent=1 // loop_header
      %s12 = sphi 0, %s16
      %p13 = scmp.ge.s32.totalorder %s12, 4
      %s22 = sphi 0, %s24
      %s25 = sphi 0, %s22
      %s26 = sphi 0, %s25
      %s42 = sphi 0, %s26
      %s46 = sphi 0, %s46
      %s48 = sphi 0, %s46
      %s49 = sphi 0, %s48
      %s63 = sphi 0, %s49
      %s67 = sphi 0, %s67
      %s69 = sphi 0, %s67
      %s70 = sphi 0, %s69
      %s84 = sphi 0, %s70
      %s90 = sphi 0, %s92
      %s93 = sphi 0, %s90
      %s94 = sphi 0, %s93
      %s110 = sphi 0, %s94
    $region4: #{tpu_custom_call.1} parent=1 // loop_header_branch
      %15 = sbr.rel (%p13) target = $region8
    $region5: #{tpu_custom_call.1} parent=1 // loop_body
      %s17 = ssub.s32 %s12, 1
      %s18 = ssub.s32 %s12, 2
      %s19 = sadd.s32 %s12, 1
      %s20 = ssub.s32 %s12, %s19
      %p21 = scmp.eq.s32.totalorder %s20, 0
      %s23 = sadd.s32 %s22, 1
      %s24 = scalar_select %p21, %s22, %s23
      %p27 = pneg %p21
      %p28 = scmp.eq.s32.totalorder %s12, 1
      %p29 = por %p27, %p28
      %p30 = scmp.ne.s32.totalorder %s22, %s25
      %p31 = scmp.eq.s32.totalorder %s12, 0
      %p32 = por %p30, %p31
      %p33 = scmp.ne.s32.totalorder %s22, %s25
      %p34 = scmp.eq.s32.totalorder %s17, 1
      %p35 = por %p33, %p34
      %p36 = scmp.ne.s32.totalorder %s25, %s26
      %p37 = scmp.eq.s32.totalorder %s17, 0
      %p38 = por %p36, %p37
      %p39 = scmp.ne.s32.totalorder %s25, %s26
      %p40 = scmp.eq.s32.totalorder %s18, 1
      %p41 = por %p39, %p40
      %p43 = scmp.ne.s32.totalorder %s26, %s42
      %p44 = scmp.eq.s32.totalorder %s18, 0
      %p45 = por %p43, %p44
      %s47 = sadd.s32 %s46, 1
      %p50 = scmp.eq.s32.totalorder %s12, 1
      %p51 = scmp.ne.s32.totalorder %s46, %s48
      %p52 = scmp.eq.s32.totalorder %s12, 0
      %p53 = por %p51, %p52
      %p54 = scmp.ne.s32.totalorder %s46, %s48
      %p55 = scmp.eq.s32.totalorder %s17, 1
      %p56 = por %p54, %p55
      %p57 = scmp.ne.s32.totalorder %s48, %s49
      %p58 = scmp.eq.s32.totalorder %s17, 0
      %p59 = por %p57, %p58
      %p60 = scmp.ne.s32.totalorder %s48, %s49
      %p61 = scmp.eq.s32.totalorder %s18, 1
      %p62 = por %p60, %p61
      %p64 = scmp.ne.s32.totalorder %s49, %s63
      %p65 = scmp.eq.s32.totalorder %s18, 0
      %p66 = por %p64, %p65
      %s68 = sadd.s32 %s67, 1
      %p71 = scmp.eq.s32.totalorder %s12, 1
      %p72 = scmp.ne.s32.totalorder %s67, %s69
      %p73 = scmp.eq.s32.totalorder %s12, 0
      %p74 = por %p72, %p73
      %p75 = scmp.ne.s32.totalorder %s67, %s69
      %p76 = scmp.eq.s32.totalorder %s17, 1
      %p77 = por %p75, %p76
      %p78 = scmp.ne.s32.totalorder %s69, %s70
      %p79 = scmp.eq.s32.totalorder %s17, 0
      %p80 = por %p78, %p79
      %p81 = scmp.ne.s32.totalorder %s69, %s70
      %p82 = scmp.eq.s32.totalorder %s18, 1
      %p83 = por %p81, %p82
      %p85 = scmp.ne.s32.totalorder %s70, %s84
      %p86 = scmp.eq.s32.totalorder %s18, 0
      %p87 = por %p85, %p86
      %s88 = ssub.s32 %s12, %s19
      %p89 = scmp.eq.s32.totalorder %s88, 0
      %s91 = sadd.s32 %s90, 1
      %s92 = scalar_select %p89, %s90, %s91
      %p95 = pneg %p89
      %p96 = scmp.eq.s32.totalorder %s12, 1
      %p97 = por %p95, %p96
      %p98 = scmp.ne.s32.totalorder %s90, %s93
      %p99 = scmp.eq.s32.totalorder %s12, 0
      %p100 = por %p98, %p99
      %p101 = scmp.ne.s32.totalorder %s90, %s93
      %p102 = scmp.eq.s32.totalorder %s17, 1
      %p103 = por %p101, %p102
      %p104 = scmp.ne.s32.totalorder %s93, %s94
      %p105 = scmp.eq.s32.totalorder %s17, 0
      %p106 = por %p104, %p105
      %p107 = scmp.ne.s32.totalorder %s93, %s94
      %p108 = scmp.eq.s32.totalorder %s18, 1
      %p109 = por %p107, %p108
      %p111 = scmp.ne.s32.totalorder %s94, %s110
      %p112 = scmp.eq.s32.totalorder %s18, 0
      %p113 = por %p111, %p112
      %p114 = scmp.le.s32.totalorder 1, %s12
      %p115 = scmp.lt.s32.totalorder %s12, 3
      %p116 = pnand %p114, %p115
      %p117 = pneg %p116
      // Predicated region
      $region9: #{tpu_custom_call.1} parent=5 // pred_check
        _
      $region10: #{tpu_custom_call.1} parent=5 // pred_check_branch
        %119 = sbr.rel (%p116) target = $region12
      $region11: #{tpu_custom_call.1} parent=5 // pred_region
        %s120 = ssub.s32 %s12, 1
        // Predicated region
        $region13: #{tpu_custom_call.1} parent=11 // pred_check
          %p121 = pneg %p59
        $region14: #{tpu_custom_call.1} parent=11 // pred_check_branch
          %123 = sbr.rel (%p121) target = $region16
        $region15: #{tpu_custom_call.1} parent=11 // pred_region
          _
        $region16: #{tpu_custom_call.1} parent=11 // pred_fallthru
          _
        // Predicated region
        $region17: #{tpu_custom_call.1} parent=11 // pred_check
          %p124 = pneg %p80
        $region18: #{tpu_custom_call.1} parent=11 // pred_check_branch
          %126 = sbr.rel (%p124) target = $region20
        $region19: #{tpu_custom_call.1} parent=11 // pred_region
          _
        $region20: #{tpu_custom_call.1} parent=11 // pred_fallthru
          _
      $region12: #{tpu_custom_call.1} parent=5 // pred_fallthru
        _
      %p127 = scmp.lt.s32.totalorder %s12, 2
      // Predicated region
      $region21: #{tpu_custom_call.1} parent=5 // pred_check
        %p128 = pneg %p127
      $region22: #{tpu_custom_call.1} parent=5 // pred_check_branch
        %130 = sbr.rel (%p128) target = $region24
      $region23: #{tpu_custom_call.1} parent=5 // pred_region
        // Predicated region
        $region25: #{tpu_custom_call.1} parent=23 // pred_check
          %p131 = pneg %p32
        $region26: #{tpu_custom_call.1} parent=23 // pred_check_branch
          %133 = sbr.rel (%p131) target = $region28
        $region27: #{tpu_custom_call.1} parent=23 // pred_region
          %p134 = scmp.lt.s32.totalorder %s12, 1
          %s135 = scalar_select %p134, %s12, 1
          %s136 = smul.addr %s135, 2
          %s137 = smul.addr %s136, 8
          %s138 = scalar_lea.vmem %s0, %s137
        $region28: #{tpu_custom_call.1} parent=23 // pred_fallthru
          _
      $region24: #{tpu_custom_call.1} parent=5 // pred_fallthru
        _
      %p139 = scmp.le.s32.totalorder 1, %s12
      %p140 = scmp.lt.s32.totalorder %s12, 3
      %p141 = pnand %p139, %p140
      %p142 = pneg %p141
      // Predicated region
      $region29: #{tpu_custom_call.1} parent=5 // pred_check
        _
      $region30: #{tpu_custom_call.1} parent=5 // pred_check_branch
        %144 = sbr.rel (%p141) target = $region32
      $region31: #{tpu_custom_call.1} parent=5 // pred_region
        %s145 = ssub.s32 %s12, 1
        %p146 = scmp.lt.s32.totalorder %s17, 1
        %s147 = scalar_select %p146, %s17, 1
        %s148 = smul.addr %s147, 2
        %s149 = smul.addr %s148, 8
        %s150 = scalar_lea.vmem %s0, %s149
        %p151 = pneg %p38
        %p152 = pneg %p35
        %p153 = pneg %p59
        %p154 = pneg %p56
        %p155 = pneg %p80
        %p156 = pneg %p77
        %p157 = pneg %p106
        %p158 = pneg %p103
        %s159 = sand.u32 %s93, 1
        %s160 = scalar_lea.sflag [#allocation3], %s159
        %s161 = sand.u32 %s93, 1
        %s162 = smul.addr %s161, 16
        %s163 = scalar_lea.vmem [#allocation2], %s162
        %p164 = scmp.lt.s32.totalorder %s17, 1
        %s165 = scalar_select %p164, %s17, 1
        %s166 = smul.addr %s165, 2
        %s167 = smul.addr %s166, 8
        %s168 = scalar_lea.vmem %s0, %s167
        %v169 = vld [vmem:[%s1] sm:$0xff]
        %v170 = vld [vmem:[%s1 + $0x8] sm:$0xff]
        %v171 = vld [vmem:[%s168] sm:$0xff]
        %v172 = vld [vmem:[%s168 + $0x8] sm:$0xff]
        %v173 = vld [vmem:[%s2] sm:$0xff]
        %v174 = vld [vmem:[%s2 + $0x8] sm:$0xff]
        %176 = vset.pattern.permute.xlu0 0
        %177 = vperm.xlu0 %176, %v173
        %v178 = vpop.permute.xlu0 %177
        %181 = vset.pattern.permute.xlu0 0
        %182 = vperm.xlu0 %181, %v174
        %v183 = vpop.permute.xlu0 %182
        %vm185 = vcmask 64512
        %v187 = vsel %vm185, %v169, 0
        %v190 = vsel %vm185, %v170, 0
        %192 = vmatprep.subr.mxu0 0.0
        %193 = vmatpush1.msra.mxu0 0.0
        %194 = vmatprep.subr.mxu0 0.0
        %195 = vmatpush1.msra.mxu0 0.0
        %196 = vmatprep.subr.mxu0 0.0
        %197 = vmatpush1.msra.mxu0 0.0
        %198 = vmatprep.subr.mxu0 0.0
        %199 = vmatpush1.msra.mxu0 0.0
        %200 = vmatprep.subr.mxu0 0.0
        %201 = vmatpush1.msra.mxu0 0.0
        %202 = vmatprep.subr.mxu0 0.0
        %203 = vmatpush1.msra.mxu0 0.0
        %204 = vmatprep.subr.mxu0 0.0
        %205 = vmatpush1.msra.mxu0 0.0
        %206 = vmatprep.subr.mxu0 0.0
        %207 = vmatpush1.msra.mxu0 0.0
        %208 = vmatprep.subr.mxu0 0.0
        %209 = vmatpush1.msra.mxu0 0.0
        %210 = vmatprep.subr.mxu0 0.0
        %211 = vmatpush1.msra.mxu0 0.0
        %212 = vmatprep.subr.mxu0 0.0
        %213 = vmatpush1.msra.mxu0 0.0
        %214 = vmatprep.subr.mxu0 0.0
        %215 = vmatpush1.msra.mxu0 0.0
        %216 = vmatprep.subr.mxu0 0.0
        %217 = vmatpush1.msra.mxu0 0.0
        %218 = vmatprep.subr.mxu0 0.0
        %219 = vmatpush1.msra.mxu0 0.0
        %220 = vmatprep.subr.mxu0 0.0
        %221 = vmatpush1.msra.mxu0 0.0
        %222 = vmatprep.subr.mxu0 %v172
        %223 = vmatpush1.msra.mxu0 %v171
        %224 = vmatprep.subr.mxu0 0.0
        %225 = vmatpush2.msra.mxu0 0.0
        %226 = vmatprep.subr.mxu0 0.0
        %227 = vmatpush2.msra.mxu0 0.0
        %228 = vmatprep.subr.mxu0 0.0
        %229 = vmatpush2.msra.mxu0 0.0
        %230 = vmatprep.subr.mxu0 0.0
        %231 = vmatpush2.msra.mxu0 0.0
        %232 = vmatprep.subr.mxu0 0.0
        %233 = vmatpush2.msra.mxu0 0.0
        %234 = vmatprep.subr.mxu0 0.0
        %235 = vmatpush2.msra.mxu0 0.0
        %236 = vmatprep.subr.mxu0 0.0
        %237 = vmatpush2.msra.mxu0 0.0
        %238 = vmatprep.subr.mxu0 0.0
        %239 = vmatpush2.msra.mxu0 0.0
        %240 = vmatprep.subr.mxu0 0.0
        %241 = vmatpush2.msra.mxu0 0.0
        %242 = vmatprep.subr.mxu0 0.0
        %243 = vmatpush2.msra.mxu0 0.0
        %244 = vmatprep.subr.mxu0 0.0
        %245 = vmatpush2.msra.mxu0 0.0
        %246 = vmatprep.subr.mxu0 0.0
        %247 = vmatpush2.msra.mxu0 0.0
        %248 = vmatprep.subr.mxu0 0.0
        %249 = vmatpush2.msra.mxu0 0.0
        %250 = vmatprep.subr.mxu0 0.0
        %251 = vmatpush2.msra.mxu0 0.0
        %252 = vmatprep.subr.mxu0 0.0
        %253 = vmatpush2.msra.mxu0 0.0
        %254 = vmatprep.subr.mxu0 0.0
        %255 = vmatpush2.msra.mxu0 0.0
        %256 = vmatprep.mubr.f32.mxu0 0.0
        %257 = vmatmul.mubr.f32.gmra.mxu0 %v187
        %v258 = vpop.f32.mrf.mxu0
        %v259 = vadd.f32 %v178, %v258
        %v260 = vpop.f32.mrf.mxu0
        %v261 = vadd.f32 %v178, %v260
        %262 = vmatprep.mubr.f32.mxu0 0.0
        %263 = vmatmul.mubr.f32.gmra.mxu0 %v190
        %v264 = vpop.f32.mrf.mxu0
        %v265 = vadd.f32 %v183, %v264
        %v266 = vpop.f32.mrf.mxu0
        %v267 = vadd.f32 %v183, %v266
        %268 = vdwg.mxu0
        %v269 = vpack.c.bf16 %v265, %v259
        %v270 = vpack.c.bf16 %v267, %v261
        %v273 = vunpack.c.l.b16 %v269
        %v274 = vunpack.c.l.b16 %v270
        %v275 = vunpack.c.h.b16 %v269
        %v276 = vunpack.c.h.b16 %v270
        %v277 = vpack.c.b16 %v274, %v273
        %v278 = vpack.c.b16 %v276, %v275
        %281 = vst [vmem:[%s163] sm:$0xff] %v277
        %282 = vst [vmem:[%s163 + $0x8] sm:$0xff] %v278
        %s283 = sand.u32 %s93, 1
        %s284 = scalar_lea.sflag [#allocation3], %s283
        %s285 = sand.u32 %s93, 1
        %s286 = smul.addr %s285, 16
        %s287 = scalar_lea.vmem [#allocation2], %s286
        // Predicated region
        $region33: #{tpu_custom_call.1} parent=31 // pred_check
          %p288 = pneg %p103
        $region34: #{tpu_custom_call.1} parent=31 // pred_check_branch
          %290 = sbr.rel (%p288) target = $region36
        $region35: #{tpu_custom_call.1} parent=31 // pred_region
          %s292 = ssub.s32 256, 256
          %293 = vsyncadd %s284, %s292
          %s294 = smul.addr %s17, 4
          %s295 = smul.addr %s294, 64
          %s296 = scalar_lea.hbm %s3, %s295
          %s297 = sshll.u32 %s287, 4
          %s298 = int_to_ptr.vmem [resolvable:$true] %s297
          %303 = dma.vmem_to_hbm [thread:$0]  %s298, 256, %s296, %s284, 128, 128, 8
        $region36: #{tpu_custom_call.1} parent=31 // pred_fallthru
          _
      $region32: #{tpu_custom_call.1} parent=5 // pred_fallthru
        _
      %p304 = scmp.le.s32.totalorder 2, %s12
      // Predicated region
      $region37: #{tpu_custom_call.1} parent=5 // pred_check
        %p305 = pneg %p304
      $region38: #{tpu_custom_call.1} parent=5 // pred_check_branch
        %307 = sbr.rel (%p305) target = $region40
      $region39: #{tpu_custom_call.1} parent=5 // pred_region
        %s308 = ssub.s32 %s12, 2
        // Predicated region
        $region41: #{tpu_custom_call.1} parent=39 // pred_check
          %p309 = pneg %p109
        $region42: #{tpu_custom_call.1} parent=39 // pred_check_branch
          %311 = sbr.rel (%p309) target = $region44
        $region43: #{tpu_custom_call.1} parent=39 // pred_region
          %s312 = sand.u32 %s94, 1
          %s313 = scalar_lea.sflag [#allocation3], %s312
          %s314 = sand.u32 %s94, 1
          %s315 = smul.addr %s314, 16
          %s316 = scalar_lea.vmem [#allocation2], %s315
          %317 = dma.done %s313, 256
        $region44: #{tpu_custom_call.1} parent=39 // pred_fallthru
          _
      $region40: #{tpu_custom_call.1} parent=5 // pred_fallthru
        _
    $region6: #{tpu_custom_call.1} parent=1 // loop_footer
      %s16 = sadd.s32 1, %s12
    $region7: #{tpu_custom_call.1} parent=1 // loop_footer_branch
      %11 = sbr.rel target = $region3
    $region8: #{tpu_custom_call.1} parent=1 // loop_exit
      _
    %318 = vsyncpa [#allocation3], 1
    %s319 = scalar_lea.sflag [#allocation3], 1
    %320 = vsyncpa %s319, 1

</llo_original>
